<compile_context>
chip_gen: v7x
topology: tpu7x:2x2x1
jax: 0.10.0
libtpu: 0.0.40
codegen_flags: <defaults>
</compile_context>

<pallas_src>
import jax
import jax.numpy as jnp
from jax.experimental import pallas as pl
from jax.experimental.pallas import tpu as pltpu


def _round_up(x, m):
    return (x + m - 1) // m * m


def _ceil_div(a, b):
    return -(-a // b)


def _vmem_capacity_bytes():
    """Best-effort physical-VMEM query; conservative (v7x, 64 MiB) fallback."""
    try:
        info = pltpu.get_tpu_info()
        for name in ("vmem_capacity_bytes", "vmem_size_bytes", "vmem_bytes"):
            cap = getattr(info, name, None)
            if cap:
                return int(cap)
    except Exception:
        pass
    return 64 << 20


def _choose_tiles(bs, c, hw, itemsize, budget):
    """Pick (c_tile, hw_tile, n_c, n_hw) so one x block (double-buffered input
    plus its f32 working set) stays under `budget` bytes.  Fails loudly."""
    work = 4 if itemsize >= 4 else 8            # f32 upcast / x*x working copy
    per_elem = 2 * itemsize + work              # 2x double-buffered + working

    def fits(c_t, hw_t):
        return bs * c_t * hw_t * per_elem <= budget

    # Channel-tile candidates, largest first: full C, then multiples of 8.
    c_cands = [c] + list(range(min(c - 1, 512) // 8 * 8, 7, -8))

    # 1) prefer an un-tiled spatial axis (a full-HW block needs no 128 align).
    fitting = [t for t in c_cands if fits(t, hw)]
    if fitting:
        divisible = [t for t in fitting if c % t == 0]
        c_t = divisible[0] if divisible else fitting[0]
        return c_t, hw, _ceil_div(c, c_t), 1

    # 2) tile the spatial (lane) axis in multiples of 128 lanes.
    c_t = c if c < 8 else 8
    max_hw = (budget // (bs * c_t * per_elem)) // 128 * 128
    if max_hw >= 128:
        # Prefer a tile that divides HW exactly (no ragged tail -> no mask).
        hw_t = max((m for m in range(128, int(max_hw) + 1, 128) if hw % m == 0),
                   default=int(max_hw))
        return c_t, int(hw_t), _ceil_div(c, c_t), _ceil_div(hw, int(hw_t))

    raise ValueError(
        f"teacher map (bs={bs}, C={c}, HW={hw}, itemsize={itemsize}) cannot be "
        f"tiled within the per-block VMEM budget of {budget} bytes; raise "
        f"block_budget_bytes or reduce the batch size.")


# --------------- Fused per-map kernel: reductions + Linear + BN + normalize --
def _make_kernel(c, hw, c_t, hw_t, n_hw):
    need_c_mask = (c % c_t) != 0                # ragged channel tail
    need_hw_mask = (hw % hw_t) != 0             # ragged spatial tail
    inv_hw = 1.0 / float(hw)
    inv_c = 1.0 / float(c)

    def kernel(x_ref, w_ref, bnp_ref, q_ref, v_ref):
        c_blk = pl.program_id(0)
        h_blk = pl.program_id(1)
        last_c = pl.num_programs(0) - 1
        last_h = pl.num_programs(1) - 1

        @pl.when(jnp.logical_and(c_blk == 0, h_blk == 0))
        def _init():
            q_ref[...] = jnp.zeros_like(q_ref)      # resident Linear accumulator
            v_ref[...] = jnp.zeros_like(v_ref)      # resident sum_c x^2 accumulator

        x = x_ref[...].astype(jnp.float32)          # (bs, c_t, hw_t)

        mask = None
        if need_c_mask:
            c_ids = jax.lax.broadcasted_iota(jnp.int32, (c_t, hw_t), 0)
            mask = (c_blk * c_t + c_ids) < c
        if need_hw_mask:
            h_ids = jax.lax.broadcasted_iota(jnp.int32, (c_t, hw_t), 1)
            hmask = (h_blk * hw_t + h_ids) < hw
            mask = hmask if mask is None else jnp.logical_and(mask, hmask)
        if mask is not None:
            x = jnp.where(mask[None, :, :], x, 0.0)

        # Query path: spatial (lane) sums contracted straight into the Linear
        # weights on the MXU; the 1/HW scale happens once, at finalize.
        ch_sum = jnp.sum(x, axis=2)                 # (bs, c_t)
        q_ref[...] += jnp.dot(ch_sum, w_ref[...],
                              preferred_element_type=jnp.float32)

        # Value path: sum over channels of x^2 into the resident output slice.
        sq = jnp.sum(x * x, axis=1)                 # (bs, hw_t)
        if n_hw == 1:
            v_ref[...] += sq
        else:
            start = pl.multiple_of(h_blk * hw_t, 128)
            v_ref[:, pl.ds(start, hw_t)] += sq

        @pl.when(jnp.logical_and(c_blk == last_c, h_blk == last_h))
        def _finalize():
            bias = bnp_ref[0:1, :]
            gamma = bnp_ref[1:2, :]
            beta = bnp_ref[2:3, :]
            # Linear(channel_mean) + BatchNorm1d (training: batch stats,
            # biased variance, eps=1e-5).
            y = q_ref[...] * inv_hw + bias
            mu = jnp.mean(y, axis=0, keepdims=True)
            var = jnp.mean((y - mu) * (y - mu), axis=0, keepdims=True)
            q_ref[...] = gamma * (y - mu) * jax.lax.rsqrt(var + 1e-5) + beta
            # Spatial mean of squares + F.normalize(dim=1), eps=1e-12.
            # (Padded lanes stayed exactly zero, so they do not bias the norm.)
            sqm = v_ref[...] * inv_c
            nrm_sq = jnp.sum(sqm * sqm, axis=1, keepdims=True)
            v_ref[...] = sqm * jax.lax.rsqrt(jnp.maximum(nrm_sq, 1e-24))

    return kernel


def _teacher_map_forward(f, p, qk, qk_pad, block_budget_bytes):
    """One fused pallas_call for one teacher map (no common-slab padding)."""
    bs, c, h, w = (int(s) for s in f.shape)
    hw = h * w
    x = f.reshape(bs, c, hw)                     # free: merges the minor dims
    itemsize = jnp.dtype(f.dtype).itemsize

    vmem_cap = _vmem_capacity_bytes()
    big_vmem = vmem_cap >= (96 << 20)            # v5e/v6e: 128 MiB, v7x: 64 MiB
    gen_cap = (96 << 20) if big_vmem else (40 << 20)
    budget = (int(block_budget_bytes) if block_budget_bytes is not None
              else ((14 << 20) if big_vmem else (7 << 20)))

    c_t, hw_t, n_c, n_hw = _choose_tiles(bs, c, hw, itemsize, budget)
    hw_out = n_hw * hw_t if n_hw > 1 else hw
    c_rows = n_c * c_t

    # Tiny parameter slabs (zero-padded): W -> (n_c*c_t, qk_pad); bias/gamma/
    # beta packed into a single (3, qk_pad) input.
    w_pad = jnp.zeros((c_rows, qk_pad), jnp.float32)
    w_pad = w_pad.at[:c, :qk].set(p["w"].astype(jnp.float32))
    bnp = jnp.zeros((3, qk_pad), jnp.float32)
    bnp = bnp.at[0, :qk].set(p["b"].reshape(-1).astype(jnp.float32))
    bnp = bnp.at[1, :qk].set(p["gamma"].reshape(-1).astype(jnp.float32))
    bnp = bnp.at[2, :qk].set(p["beta"].reshape(-1).astype(jnp.float32))

    # VMEM footprint: double-buffered x blocks + f32 working set + resident
    # outputs (accumulated in place) + small parameter tiles.
    work = 4 if itemsize >= 4 else 8
    x_elems = bs * c_t * hw_t
    need = (2 * x_elems * itemsize + x_elems * work
            + bs * (qk_pad + hw_out) * 4
            + 2 * (c_t + 3) * qk_pad * 4)
    if need > gen_cap:
        raise ValueError(
            f"VMEM footprint {need} B exceeds the {gen_cap} B cap for this TPU "
            f"generation (map bs={bs}, C={c}, HW={hw}); lower block_budget_bytes.")
    vmem_limit = int(min(max(2 * need, 8 << 20), gen_cap))

    cost = pl.CostEstimate(
        flops=int(3 * bs * c * hw + 2 * bs * c_rows * qk_pad
                  + 10 * bs * qk_pad + 4 * bs * hw_out),
        transcendentals=int(qk_pad + bs),
        bytes_accessed=int(bs * c * hw * itemsize + (c_rows + 3) * qk_pad * 4
                           + bs * (qk_pad + hw_out) * 4))

    q_pad, v_pad = pl.pallas_call(
        _make_kernel(c, hw, c_t, hw_t, n_hw),
        out_shape=(jax.ShapeDtypeStruct((bs, qk_pad), jnp.float32),
                   jax.ShapeDtypeStruct((bs, hw_out), jnp.float32)),
        grid=(n_c, n_hw),
        in_specs=[
            pl.BlockSpec((bs, c_t, hw_t), lambda i, j: (0, i, j)),   # x tiles
            pl.BlockSpec((c_t, qk_pad),   lambda i, j: (i, 0)),      # W rows
            pl.BlockSpec((3, qk_pad),     lambda i, j: (0, 0)),      # b/gamma/beta
        ],
        out_specs=(
            pl.BlockSpec((bs, qk_pad), lambda i, j: (0, 0)),   # resident query acc
            pl.BlockSpec((bs, hw_out), lambda i, j: (0, 0)),   # resident value acc
        ),
        compiler_params=pltpu.CompilerParams(
            dimension_semantics=("arbitrary", "arbitrary"),
            vmem_limit_bytes=vmem_limit),
        cost_estimate=cost,
    )(x, w_pad, bnp)

    return q_pad[:, :qk], v_pad[:, :hw]


# ---------------- Module forward ----------------
def linear_transform_teacher(g_t, params, *, block_budget_bytes=None):
    """g_t: list of NCHW teacher maps; params[i]: dict with 'w' [C_i, qk],
    'b'/'gamma'/'beta' [1, qk].  Returns (query [bs, n_t, qk], values list)."""
    # TODO(synk): v7x dual-TensorCore split of a single map's reduction
    # (core_map + cross-core combine) not implemented; maps run sequentially.
    qk = int(params[0]["w"].shape[1])
    qk_pad = _round_up(qk, 128)
    queries, values = [], []
    for f, p in zip(g_t, params):
        q, v = _teacher_map_forward(f, p, qk, qk_pad, block_budget_bytes)
        queries.append(q)
        values.append(v)
    return jnp.stack(queries, axis=1), values


def init_params(t_shapes, qk_dim, key):
    params = []
    for t_shape in t_shapes:
        c_in = t_shape[1]
        key, k_w, k_b = jax.random.split(key, 3)
        bound = 1.0 / jnp.sqrt(c_in)
        # nn.Linear weight is [qk_dim, c_in]; we store the transpose [c_in, qk_dim]
        w = jax.random.uniform(k_w, (c_in, qk_dim), jnp.float32, -bound, bound)
        b = jax.random.uniform(k_b, (1, qk_dim), jnp.float32, -bound, bound)
        gamma = jnp.ones((1, qk_dim), jnp.float32)    # BN weight default init
        beta = jnp.zeros((1, qk_dim), jnp.float32)    # BN bias default init
        params.append({"w": w, "b": b, "gamma": gamma, "beta": beta})
    return params


def _reference(g_t, params):
    """Pure-JAX reference matching the PyTorch semantics."""
    queries, values = [], []
    for f, p in zip(g_t, params):
        bs, c, h, w = f.shape
        x = f.reshape(bs, c, h * w).astype(jnp.float32)
        cm = jnp.mean(x, axis=2)
        y = cm @ p["w"] + p["b"]
        mu = jnp.mean(y, axis=0, keepdims=True)
        var = jnp.mean((y - mu) ** 2, axis=0, keepdims=True)
        q = p["gamma"] * (y - mu) / jnp.sqrt(var + 1e-5) + p["beta"]
        sq = jnp.mean(x * x, axis=1)
        nrm = jnp.sqrt(jnp.sum(sq * sq, axis=1, keepdims=True))
        v = sq / jnp.maximum(nrm, 1e-12)
        queries.append(q)
        values.append(v)
    return jnp.stack(queries, axis=1), values


if __name__ == "__main__":
    key = jax.random.PRNGKey(0)
    bs, qk_dim = 2, 32
    # Heterogeneous teacher feature maps (NCHW); the third one has non-multiple
    # C/HW so the ragged-tail mask path is exercised under a forced budget.
    t_shapes = [(bs, 4, 16, 16), (bs, 8, 8, 8), (bs, 20, 18, 22)]

    keys = jax.random.split(key, len(t_shapes) + 1)
    g_t = [jax.random.normal(k, s, jnp.float32) for k, s in zip(keys[:-1], t_shapes)]
    params = init_params(t_shapes, qk_dim, keys[-1])

    q_ref, v_ref = _reference(g_t, params)

    # 1) Default (generation-aware) tiling.
    query, value = linear_transform_teacher(g_t, params)
    jax.block_until_ready(query)
    for v in value:
        jax.block_until_ready(v)
    assert query.shape == (bs, len(t_shapes), qk_dim)
    for v, s in zip(value, t_shapes):
        assert v.shape == (bs, s[2] * s[3])
    assert jnp.allclose(query, q_ref, rtol=1e-3, atol=1e-3)
    for a, b in zip(value, v_ref):
        assert jnp.allclose(a, b, rtol=1e-3, atol=1e-3)

    # 2) Force a tiny block budget to exercise channel/spatial tiling + masks.
    query2, value2 = linear_transform_teacher(g_t, params,
                                              block_budget_bytes=64 * 1024)
    jax.block_until_ready(query2)
    for v in value2:
        jax.block_until_ready(v)
    assert jnp.allclose(query2, q_ref, rtol=1e-3, atol=1e-3)
    for a, b in zip(value2, v_ref):
        assert jnp.allclose(a, b, rtol=1e-3, atol=1e-3)

    print("KERNEL_OK")
</pallas_src>

<mosaic_0001>
module attributes {stable_mosaic.version = 11 : i64} {
  func.func @kernel(%arg0: i32, %arg1: i32, %arg2: memref<2x4x256xf32, #tpu.memory_space<vmem>>, %arg3: memref<4x128xf32, #tpu.memory_space<vmem>>, %arg4: memref<3x128xf32, #tpu.memory_space<vmem>>, %arg5: memref<2x128xf32, #tpu.memory_space<vmem>>, %arg6: memref<2x256xf32, #tpu.memory_space<vmem>>) attributes {dimension_semantics = [#tpu.dimension_semantics<arbitrary>, #tpu.dimension_semantics<arbitrary>], iteration_bounds = array<i64: 1, 1>, scalar_prefetch = 0 : i64, scratch_operands = 0 : i64, tpu.core_type = #tpu.core_type<tc>, window_params = [{transform_indices = @transform_0, window_bounds = array<i64: 2, 4, 256>}, {transform_indices = @transform_1, window_bounds = array<i64: 4, 128>}, {pipeline_mode = #tpu.pipeline_mode<synchronous>, transform_indices = @transform_2, window_bounds = array<i64: 3, 128>}, {pipeline_mode = #tpu.pipeline_mode<synchronous>, transform_indices = @transform_3, window_bounds = array<i64: 2, 128>}, {pipeline_mode = #tpu.pipeline_mode<synchronous>, transform_indices = @transform_4, window_bounds = array<i64: 2, 256>}]} {
    %c0_i32 = arith.constant 0 : i32
    %0 = arith.cmpi eq, %arg0, %c0_i32 : i32
    %c0_i32_0 = arith.constant 0 : i32
    %1 = arith.cmpi eq, %arg1, %c0_i32_0 : i32
    %2 = arith.andi %0, %1 : i1
    %3 = arith.extui %2 : i1 to i32
    %c0_i32_1 = arith.constant 0 : i32
    %4 = arith.cmpi ne, %3, %c0_i32_1 : i32
    scf.if %4 {
      %cst_19 = arith.constant 0.000000e+00 : f32
      %22 = vector.broadcast %cst_19 : f32 to vector<2x128xf32>
      %c0_20 = arith.constant 0 : index
      %c0_21 = arith.constant 0 : index
      %23 = vector.load %arg5[%c0_20, %c0_21] : memref<2x128xf32, #tpu.memory_space<vmem>>, vector<2x128xf32>
      tpu.vector_store %arg5[%c0_20, %c0_21], %22 {strides = array<i32>} : memref<2x128xf32, #tpu.memory_space<vmem>>, vector<2x128xf32>,
      %cst_22 = arith.constant 0.000000e+00 : f32
      %24 = vector.broadcast %cst_22 : f32 to vector<2x256xf32>
      %c0_23 = arith.constant 0 : index
      %c0_24 = arith.constant 0 : index
      %25 = vector.load %arg6[%c0_23, %c0_24] : memref<2x256xf32, #tpu.memory_space<vmem>>, vector<2x256xf32>
      tpu.vector_store %arg6[%c0_23, %c0_24], %24 {strides = array<i32>} : memref<2x256xf32, #tpu.memory_space<vmem>>, vector<2x256xf32>,
    } else {
    }
    %c0 = arith.constant 0 : index
    %c0_2 = arith.constant 0 : index
    %c0_3 = arith.constant 0 : index
    %5 = vector.load %arg2[%c0, %c0_2, %c0_3] : memref<2x4x256xf32, #tpu.memory_space<vmem>>, vector<2x4x256xf32>
    %cst = arith.constant dense<0.000000e+00> : vector<2x4xf32>
    %6 = vector.multi_reduction <add>, %5, %cst [2] : vector<2x4x256xf32> to vector<2x4xf32>
    %c0_4 = arith.constant 0 : index
    %c0_5 = arith.constant 0 : index
    %7 = vector.load %arg5[%c0_4, %c0_5] : memref<2x128xf32, #tpu.memory_space<vmem>>, vector<2x128xf32>
    %c0_6 = arith.constant 0 : index
    %c0_7 = arith.constant 0 : index
    %8 = vector.load %arg3[%c0_6, %c0_7] : memref<4x128xf32, #tpu.memory_space<vmem>>, vector<4x128xf32>
    %cst_8 = arith.constant dense<0.000000e+00> : vector<2x128xf32>
    %9 = tpu.matmul %6, %8, %cst_8 {dimension_numbers = #tpu.dot_dimension_numbers<[1], [0], [0], [1], [0, 0, 1, 1], [], []>} : vector<2x4xf32>, vector<4x128xf32>, vector<2x128xf32> -> vector<2x128xf32>
    %10 = arith.addf %7, %9 : vector<2x128xf32>
    %c0_9 = arith.constant 0 : index
    %c0_10 = arith.constant 0 : index
    %11 = vector.load %arg5[%c0_9, %c0_10] : memref<2x128xf32, #tpu.memory_space<vmem>>, vector<2x128xf32>
    tpu.vector_store %arg5[%c0_9, %c0_10], %10 {strides = array<i32>} : memref<2x128xf32, #tpu.memory_space<vmem>>, vector<2x128xf32>,
    %12 = arith.mulf %5, %5 : vector<2x4x256xf32>
    %cst_11 = arith.constant dense<0.000000e+00> : vector<2x256xf32>
    %13 = vector.multi_reduction <add>, %12, %cst_11 [1] : vector<2x4x256xf32> to vector<2x256xf32>
    %c0_12 = arith.constant 0 : index
    %c0_13 = arith.constant 0 : index
    %14 = vector.load %arg6[%c0_12, %c0_13] : memref<2x256xf32, #tpu.memory_space<vmem>>, vector<2x256xf32>
    %15 = arith.addf %14, %13 : vector<2x256xf32>
    %c0_14 = arith.constant 0 : index
    %c0_15 = arith.constant 0 : index
    %16 = vector.load %arg6[%c0_14, %c0_15] : memref<2x256xf32, #tpu.memory_space<vmem>>, vector<2x256xf32>
    tpu.vector_store %arg6[%c0_14, %c0_15], %15 {strides = array<i32>} : memref<2x256xf32, #tpu.memory_space<vmem>>, vector<2x256xf32>,
    %c0_i32_16 = arith.constant 0 : i32
    %17 = arith.cmpi eq, %arg0, %c0_i32_16 : i32
    %c0_i32_17 = arith.constant 0 : i32
    %18 = arith.cmpi eq, %arg1, %c0_i32_17 : i32
    %19 = arith.andi %17, %18 : i1
    %20 = arith.extui %19 : i1 to i32
    %c0_i32_18 = arith.constant 0 : i32
    %21 = arith.cmpi ne, %20, %c0_i32_18 : i32
    scf.if %21 {
      %c0_19 = arith.constant 0 : index
      %c0_20 = arith.constant 0 : index
      %22 = vector.load %arg4[%c0_19, %c0_20] : memref<3x128xf32, #tpu.memory_space<vmem>>, vector<1x128xf32>
      %c1 = arith.constant 1 : index
      %c0_21 = arith.constant 0 : index
      %23 = vector.load %arg4[%c1, %c0_21] : memref<3x128xf32, #tpu.memory_space<vmem>>, vector<1x128xf32>
      %c2 = arith.constant 2 : index
      %c0_22 = arith.constant 0 : index
      %24 = vector.load %arg4[%c2, %c0_22] : memref<3x128xf32, #tpu.memory_space<vmem>>, vector<1x128xf32>
      %c0_23 = arith.constant 0 : index
      %c0_24 = arith.constant 0 : index
      %25 = vector.load %arg5[%c0_23, %c0_24] : memref<2x128xf32, #tpu.memory_space<vmem>>, vector<2x128xf32>
      %cst_25 = arith.constant 3.906250e-03 : f32
      %26 = vector.broadcast %cst_25 : f32 to vector<2x128xf32>
      %27 = arith.mulf %25, %26 : vector<2x128xf32>
      %28 = vector.broadcast %22 : vector<1x128xf32> to vector<2x128xf32>
      %29 = arith.addf %27, %28 : vector<2x128xf32>
      %cst_26 = arith.constant dense<0.000000e+00> : vector<128xf32>
      %30 = vector.multi_reduction <add>, %29, %cst_26 [0] : vector<2x128xf32> to vector<128xf32>
      %31 = vector.shape_cast %30 : vector<128xf32> to vector<1x128xf32>
      %cst_27 = arith.constant 2.000000e+00 : f32
      %32 = vector.broadcast %cst_27 : f32 to vector<1x128xf32>
      %33 = arith.divf %31, %32 : vector<1x128xf32>
      %34 = vector.broadcast %33 : vector<1x128xf32> to vector<2x128xf32>
      %35 = arith.subf %29, %34 : vector<2x128xf32>
      %36 = vector.broadcast %33 : vector<1x128xf32> to vector<2x128xf32>
      %37 = arith.subf %29, %36 : vector<2x128xf32>
      %38 = arith.mulf %35, %37 : vector<2x128xf32>
      %cst_28 = arith.constant dense<0.000000e+00> : vector<128xf32>
      %39 = vector.multi_reduction <add>, %38, %cst_28 [0] : vector<2x128xf32> to vector<128xf32>
      %40 = vector.shape_cast %39 : vector<128xf32> to vector<1x128xf32>
      %cst_29 = arith.constant 2.000000e+00 : f32
      %41 = vector.broadcast %cst_29 : f32 to vector<1x128xf32>
      %42 = arith.divf %40, %41 : vector<1x128xf32>
      %43 = vector.broadcast %33 : vector<1x128xf32> to vector<2x128xf32>
      %44 = arith.subf %29, %43 : vector<2x128xf32>
      %45 = vector.broadcast %23 : vector<1x128xf32> to vector<2x128xf32>
      %46 = arith.mulf %45, %44 : vector<2x128xf32>
      %cst_30 = arith.constant 9.99999974E-6 : f32
      %47 = vector.broadcast %cst_30 : f32 to vector<1x128xf32>
      %48 = arith.addf %42, %47 : vector<1x128xf32>
      %49 = math.rsqrt %48 : vector<1x128xf32>
      %50 = vector.broadcast %49 : vector<1x128xf32> to vector<2x128xf32>
      %51 = arith.mulf %46, %50 : vector<2x128xf32>
      %52 = vector.broadcast %24 : vector<1x128xf32> to vector<2x128xf32>
      %53 = arith.addf %51, %52 : vector<2x128xf32>
      %c0_31 = arith.constant 0 : index
      %c0_32 = arith.constant 0 : index
      %54 = vector.load %arg5[%c0_31, %c0_32] : memref<2x128xf32, #tpu.memory_space<vmem>>, vector<2x128xf32>
      tpu.vector_store %arg5[%c0_31, %c0_32], %53 {strides = array<i32>} : memref<2x128xf32, #tpu.memory_space<vmem>>, vector<2x128xf32>,
      %c0_33 = arith.constant 0 : index
      %c0_34 = arith.constant 0 : index
      %55 = vector.load %arg6[%c0_33, %c0_34] : memref<2x256xf32, #tpu.memory_space<vmem>>, vector<2x256xf32>
      %cst_35 = arith.constant 2.500000e-01 : f32
      %56 = vector.broadcast %cst_35 : f32 to vector<2x256xf32>
      %57 = arith.mulf %55, %56 : vector<2x256xf32>
      %58 = arith.mulf %57, %57 : vector<2x256xf32>
      %cst_36 = arith.constant dense<0.000000e+00> : vector<2xf32>
      %59 = vector.multi_reduction <add>, %58, %cst_36 [1] : vector<2x256xf32> to vector<2xf32>
      %60 = vector.shape_cast %59 : vector<2xf32> to vector<2x1xf32>
      %cst_37 = arith.constant 1.000000e-24 : f32
      %61 = vector.broadcast %cst_37 : f32 to vector<2x1xf32>
      %62 = arith.maximumf %60, %61 : vector<2x1xf32>
      %63 = math.rsqrt %62 : vector<2x1xf32>
      %64 = vector.broadcast %63 : vector<2x1xf32> to vector<2x256xf32>
      %65 = arith.mulf %57, %64 : vector<2x256xf32>
      %c0_38 = arith.constant 0 : index
      %c0_39 = arith.constant 0 : index
      %66 = vector.load %arg6[%c0_38, %c0_39] : memref<2x256xf32, #tpu.memory_space<vmem>>, vector<2x256xf32>
      tpu.vector_store %arg6[%c0_38, %c0_39], %65 {strides = array<i32>} : memref<2x256xf32, #tpu.memory_space<vmem>>, vector<2x256xf32>,
    } else {
    }
    return
  }
  func.func @transform_0(%arg0: i32, %arg1: i32) -> (i32, i32, i32) {
    %c0_i32 = arith.constant 0 : i32
    %c0_i32_0 = arith.constant 0 : i32
    return %c0_i32, %arg0, %arg1 : i32, i32, i32
  }
  func.func @transform_1(%arg0: i32, %arg1: i32) -> (i32, i32) {
    %c0_i32 = arith.constant 0 : i32
    %c0_i32_0 = arith.constant 0 : i32
    return %arg0, %c0_i32 : i32, i32
  }
  func.func @transform_2(%arg0: i32, %arg1: i32) -> (i32, i32) {
    %c0_i32 = arith.constant 0 : i32
    %c0_i32_0 = arith.constant 0 : i32
    %c0_i32_1 = arith.constant 0 : i32
    return %c0_i32, %c0_i32_0 : i32, i32
  }
  func.func @transform_3(%arg0: i32, %arg1: i32) -> (i32, i32) {
    %c0_i32 = arith.constant 0 : i32
    %c0_i32_0 = arith.constant 0 : i32
    %c0_i32_1 = arith.constant 0 : i32
    return %c0_i32, %c0_i32_0 : i32, i32
  }
  func.func @transform_4(%arg0: i32, %arg1: i32) -> (i32, i32) {
    %c0_i32 = arith.constant 0 : i32
    %c0_i32_0 = arith.constant 0 : i32
    %c0_i32_1 = arith.constant 0 : i32
    return %c0_i32, %c0_i32_0 : i32, i32
  }
}

</mosaic_0001>

<llo_original>
// kernel: tpu_custom_call.1
$region0: #{tpu_custom_call.1}
  #allocation0 [shape = 'u32[]', space=smem, size = 0x4, offset = 0x4, fixed_abs, tag = 'smem constant byte address 0x4 - core index']
  #allocation1 [shape = 'u32[144,128]{1,0:T(1,128)}', space=vmem, size = 0x12000, scoped, tag = 'internal scratch']
  %s0 = inlined_call_operand.hbm [shape: f32[2,4,256], index: 0, kind: input, shape index: {}]
  %s1 = inlined_call_operand.hbm [shape: f32[4,128], index: 1, kind: input, shape index: {}]
  %s2 = inlined_call_operand.vmem [shape: f32[3,128], index: 2, kind: input, shape index: {}]
  %s3 = inlined_call_operand.hbm [shape: f32[2,128], index: 3, kind: output, shape index: {0}]
  %s4 = inlined_call_operand.hbm [shape: f32[2,256], index: 4, kind: output, shape index: {1}]
  %5 = xla_tuple %s3, %s4
  %s6 = sld [smem:[#allocation0]]
  $region46: #{tpu_custom_call.1} parent=0
    _
  %s8 = ssub.s32 1, %s6
  %s9 = scalar_select 0, %s8, %s6
  $region1: #{tpu_custom_call.1} parent=0
    #allocation2 [shape = 'u8[8192]{0}', space=vmem, size = 0x2000, scoped, tag = 'input window, operand 0, single buffered']
    #allocation3 [shape = 's32[1]{0}', space=sflag, size = 0x4, scoped, tag = 'scoped memory for tpu_custom_call.1']
    #allocation4 [shape = 's32[1]{0}', space=sflag, size = 0x4, scoped, tag = 'scoped memory for tpu_custom_call.1']
    #allocation5 [shape = 'u8[2048]{0}', space=vmem, size = 0x800, scoped, tag = 'input window, operand 1, single buffered']
    #allocation6 [shape = 's32[1]{0}', space=sflag, size = 0x4, scoped, tag = 'scoped memory for tpu_custom_call.1']
    #allocation7 [shape = 'u8[1024]{0}', space=vmem, size = 0x400, scoped, tag = 'output window, operand 0, single buffered']
    #allocation8 [shape = 'u8[2048]{0}', space=vmem, size = 0x800, scoped, tag = 'output window, operand 1, single buffered']
    #allocation9 [shape = 's32[1]{0}', space=sflag, size = 0x4, scoped, tag = 'scoped memory for tpu_custom_call.1']
    %10 = vsyncpa [#allocation3], 0
    %11 = vsyncpa [#allocation6], 0
    %12 = vsyncpa [#allocation4], 0
    %13 = vsyncpa [#allocation9], 0
    // Predicated region
    $region2: #{tpu_custom_call.1} parent=1 // pred_check
      _
    $region3: #{tpu_custom_call.1} parent=1 // pred_check_branch
      %15 = sbr.rel (0) target = $region5
    $region4: #{tpu_custom_call.1} parent=1 // pred_region
      %s17 = ssub.s32 256, 256
      %18 = vsyncadd [#allocation3], %s17
      %s19 = sshll.u32 [#allocation2], 4
      %s20 = int_to_ptr.vmem [resolvable:$true] %s19
      %25 = dma.hbm_to_vmem [thread:$0]  %s0, 256, %s20, [#allocation3], 128, 128, 8
    $region5: #{tpu_custom_call.1} parent=1 // pred_fallthru
      _
    // Predicated region
    $region6: #{tpu_custom_call.1} parent=1 // pred_check
      _
    $region7: #{tpu_custom_call.1} parent=1 // pred_check_branch
      %27 = sbr.rel (0) target = $region9
    $region8: #{tpu_custom_call.1} parent=1 // pred_region
      %s29 = ssub.s32 64, 64
      %30 = vsyncadd [#allocation6], %s29
      %s32 = sshll.u32 [#allocation5], 4
      %s33 = int_to_ptr.vmem [resolvable:$true] %s32
      %35 = dma.hbm_to_vmem [thread:$0]  %s1, 64, %s33, [#allocation6]
    $region9: #{tpu_custom_call.1} parent=1 // pred_fallthru
      _
    // Predicated region
    $region10: #{tpu_custom_call.1} parent=1 // pred_check
      _
    $region11: #{tpu_custom_call.1} parent=1 // pred_check_branch
      %37 = sbr.rel (0) target = $region13
    $region12: #{tpu_custom_call.1} parent=1 // pred_region
      _
    $region13: #{tpu_custom_call.1} parent=1 // pred_fallthru
      _
    // Predicated region
    $region14: #{tpu_custom_call.1} parent=1 // pred_check
      _
    $region15: #{tpu_custom_call.1} parent=1 // pred_check_branch
      %39 = sbr.rel (0) target = $region17
    $region16: #{tpu_custom_call.1} parent=1 // pred_region
      %40 = dma.done [#allocation3], 256
    $region17: #{tpu_custom_call.1} parent=1 // pred_fallthru
      _
    // Predicated region
    $region18: #{tpu_custom_call.1} parent=1 // pred_check
      _
    $region19: #{tpu_custom_call.1} parent=1 // pred_check_branch
      %42 = sbr.rel (0) target = $region21
    $region20: #{tpu_custom_call.1} parent=1 // pred_region
      %43 = dma.done [#allocation6], 64
    $region21: #{tpu_custom_call.1} parent=1 // pred_fallthru
      _
    %p44 = scmp.eq.s32.totalorder 0, 0
    %p45 = scmp.eq.s32.totalorder 0, 0
    %p46 = pnand %p44, %p45
    %p47 = pneg %p46
    // Predicated region
    $region22: #{tpu_custom_call.1} parent=1 // pred_check
      _
    $region23: #{tpu_custom_call.1} parent=1 // pred_check_branch
      %49 = sbr.rel (%p46) target = $region25
    $region24: #{tpu_custom_call.1} parent=1 // pred_region
      %50 = vst [vmem:[#allocation7] sm:$0x3] 0.0
      %51 = vst [vmem:[#allocation8] sm:$0xf] 0.0
    $region25: #{tpu_custom_call.1} parent=1 // pred_fallthru
      _
    %v52 = vld [vmem:[#allocation2] sm:$0xff]
    %v53 = vld [vmem:[#allocation2 + $0x8] sm:$0xff]
    %v56 = vcombine.high %v52, %v52
    %v57 = vcombine.high %v53, %v53
    %vm60 = vcmask 1043456
    %v61 = vsel %vm60, %v52, 0.0
    %v62 = vsel %vm60, %v56, 0.0
    %v63 = vadd.f32 %v61, %v62
    %64 = vadd.xlane.f32.xlu0 %v63
    %v65 = vpop.xlane.xlu0 %64
    %v66 = vsel %vm60, %v53, 0.0
    %v67 = vsel %vm60, %v57, 0.0
    %v68 = vadd.f32 %v66, %v67
    %69 = vadd.xlane.f32.xlu0 %v68
    %v70 = vpop.xlane.xlu0 %69
    %v71 = vld [vmem:[#allocation7] sm:$0x3]
    %v72 = vld [vmem:[#allocation5] sm:$0xf]
    %v75 = vlaneseq
    %v76 = vand.u32 %v75, 127
    %v77 = vlaneseq
    %v78 = vshrl.u32 %v77, 7
    %v79 = vsub.s32 %v76, %v78
    %v80 = vrot.slane %v65, %v79
    %v81 = vlaneseq
    %v82 = vshrl.u32 %v81, 7
    %v83 = vsub.s32 %v76, %v82
    %v84 = vrot.slane %v70, %v83
    %vm85 = vcmask 1041409
    %v86 = vsel %vm85, %v84, %v80
    %vm87 = vcmask 31744
    %v88 = vsel %vm87, %v86, 0
    %v91 = vsel %vm60, %v72, 0
    %93 = vmatprep.subr.mxu0 0.0
    %94 = vmatpush1.msra.mxu0 %v91
    %95 = vmatprep.subr.mxu0 0.0
    %96 = vmatpush1.msra.mxu0 0.0
    %97 = vmatprep.subr.mxu0 0.0
    %98 = vmatpush1.msra.mxu0 0.0
    %99 = vmatprep.subr.mxu0 0.0
    %100 = vmatpush1.msra.mxu0 0.0
    %101 = vmatprep.subr.mxu0 0.0
    %102 = vmatpush1.msra.mxu0 0.0
    %103 = vmatprep.subr.mxu0 0.0
    %104 = vmatpush1.msra.mxu0 0.0
    %105 = vmatprep.subr.mxu0 0.0
    %106 = vmatpush1.msra.mxu0 0.0
    %107 = vmatprep.subr.mxu0 0.0
    %108 = vmatpush1.msra.mxu0 0.0
    %109 = vmatprep.subr.mxu0 0.0
    %110 = vmatpush1.msra.mxu0 0.0
    %111 = vmatprep.subr.mxu0 0.0
    %112 = vmatpush1.msra.mxu0 0.0
    %113 = vmatprep.subr.mxu0 0.0
    %114 = vmatpush1.msra.mxu0 0.0
    %115 = vmatprep.subr.mxu0 0.0
    %116 = vmatpush1.msra.mxu0 0.0
    %117 = vmatprep.subr.mxu0 0.0
    %118 = vmatpush1.msra.mxu0 0.0
    %119 = vmatprep.subr.mxu0 0.0
    %120 = vmatpush1.msra.mxu0 0.0
    %121 = vmatprep.subr.mxu0 0.0
    %122 = vmatpush1.msra.mxu0 0.0
    %123 = vmatprep.subr.mxu0 0.0
    %124 = vmatpush1.msra.mxu0 0.0
    %125 = vmatprep.subr.mxu0 0.0
    %126 = vmatpush1.msra.mxu0 0.0
    %127 = vmatprep.subr.mxu0 0.0
    %128 = vmatpush1.msra.mxu0 0.0
    %129 = vmatprep.subr.mxu0 0.0
    %130 = vmatpush1.msra.mxu0 0.0
    %131 = vmatprep.subr.mxu0 0.0
    %132 = vmatpush1.msra.mxu0 0.0
    %133 = vmatprep.subr.mxu0 0.0
    %134 = vmatpush1.msra.mxu0 0.0
    %135 = vmatprep.subr.mxu0 0.0
    %136 = vmatpush1.msra.mxu0 0.0
    %137 = vmatprep.subr.mxu0 0.0
    %138 = vmatpush1.msra.mxu0 0.0
    %139 = vmatprep.subr.mxu0 0.0
    %140 = vmatpush1.msra.mxu0 0.0
    %141 = vmatprep.subr.mxu0 0.0
    %142 = vmatpush1.msra.mxu0 0.0
    %143 = vmatprep.subr.mxu0 0.0
    %144 = vmatpush1.msra.mxu0 0.0
    %145 = vmatprep.subr.mxu0 0.0
    %146 = vmatpush1.msra.mxu0 0.0
    %147 = vmatprep.subr.mxu0 0.0
    %148 = vmatpush1.msra.mxu0 0.0
    %149 = vmatprep.subr.mxu0 0.0
    %150 = vmatpush1.msra.mxu0 0.0
    %151 = vmatprep.subr.mxu0 0.0
    %152 = vmatpush1.msra.mxu0 0.0
    %153 = vmatprep.subr.mxu0 0.0
    %154 = vmatpush1.msra.mxu0 0.0
    %155 = vmatprep.subr.mxu0 0.0
    %156 = vmatpush1.msra.mxu0 0.0
    %157 = vmatprep.mubr.f32.mxu0 0.0
    %158 = vmatmul.mubr.f32.gmra.mrb[0].mxu0 %v88
    %v159 = vpop.f32.mrb[0].mxu0
    %v160 = vadd.f32 0.0, %v159
    %v161 = vpop.f32.mrb[0].mxu0
    %162 = vdwg.mxu0
    %v163 = vadd.f32 %v71, %v160
    %164 = vst [vmem:[#allocation7] sm:$0x3] %v163
    %v165 = vmul.f32 %v52, %v52
    %v166 = vmul.f32 %v53, %v53
    %v169 = vcombine.high %v165, %v165
    %v170 = vcombine.high %v166, %v166
    %v173 = vsel %vm60, %v165, 0.0
    %v174 = vrot.slane %v173, 4
    %v175 = vadd.f32 %v173, %v174
    %v176 = vrot.slane %v175, 2
    %v177 = vadd.f32 %v175, %v176
    %v178 = vrot.slane %v177, 1
    %v179 = vadd.f32 %v177, %v178
    %v180 = vsel %vm60, %v169, 0.0
    %v181 = vrot.slane %v180, 4
    %v182 = vadd.f32 %v180, %v181
    %v183 = vrot.slane %v182, 2
    %v184 = vadd.f32 %v182, %v183
    %v185 = vrot.slane %v184, 1
    %v186 = vadd.f32 %v184, %v185
    %v187 = vsel %vm60, %v166, 0.0
    %v188 = vrot.slane %v187, 4
    %v189 = vadd.f32 %v187, %v188
    %v190 = vrot.slane %v189, 2
    %v191 = vadd.f32 %v189, %v190
    %v192 = vrot.slane %v191, 1
    %v193 = vadd.f32 %v191, %v192
    %v194 = vsel %vm60, %v170, 0.0
    %v195 = vrot.slane %v194, 4
    %v196 = vadd.f32 %v194, %v195
    %v197 = vrot.slane %v196, 2
    %v198 = vadd.f32 %v196, %v197
    %v199 = vrot.slane %v198, 1
    %v200 = vadd.f32 %v198, %v199
    %v201 = vld [vmem:[#allocation8] sm:$0xf]
    %v206 = vcombine.low %v179, %v186
    %v208 = vunpack.c.l.s4 1983009808
    %v209 = vunpack.c.0.s8 %v208
    %v210 = vlaneseq
    %v211 = vshrl.u32 %v210, 7
    %v212 = vsub.s32 %v209, %v211
    %v213 = vrot.slane %v206, %v212
    %v214 = vcombine.low %v193, %v200
    %v216 = vunpack.c.l.s4 1983009808
    %v217 = vunpack.c.0.s8 %v216
    %v218 = vlaneseq
    %v219 = vshrl.u32 %v218, 7
    %v220 = vsub.s32 %v217, %v219
    %v221 = vrot.slane %v214, %v220
    %vm222 = vcmask 1044484
    %v223 = vsel %vm222, %v213, %v213
    %vm224 = vcmask 1046534
    %v225 = vsel %vm224, %v213, %v223
    %v226 = vrot.slane %v221, 7
    %v227 = vsel %vm85, %v226, %v225
    %vm228 = vcmask 1043459
    %v229 = vsel %vm228, %v226, %v227
    %vm230 = vcmask 1045509
    %v231 = vsel %vm230, %v226, %v229
    %vm232 = vcmask 1047559
    %v233 = vsel %vm232, %v226, %v231
    %v235 = vadd.f32 %v201, %v233
    %236 = vst [vmem:[#allocation8] sm:$0xf] %v235
    // Predicated region
    $region26: #{tpu_custom_call.1} parent=1 // pred_check
      _
    $region27: #{tpu_custom_call.1} parent=1 // pred_check_branch
      %238 = sbr.rel (%p46) target = $region29
    $region28: #{tpu_custom_call.1} parent=1 // pred_region
      %v239 = vld [vmem:[%s2] sm:$0x1]
      %v240 = vld [vmem:[%s2 + $0x1] sm:$0x1]
      %v241 = vld [vmem:[%s2 + $0x2] sm:$0x1]
      %v242 = vld [vmem:[#allocation7] sm:$0x3]
      %v243 = vmul.f32 %v242, 0.00390625
      %v244 = vlaneseq
      %v245 = vshrl.u32 %v244, 7
      %v246 = vsub.s32 0, %v245
      %v247 = vrot.slane %v239, %v246
      %v248 = vadd.f32 %v243, %v247
      %vm249 = vcmask 1041408
      %v250 = vsel %vm249, %v248, 0.0
      %v251 = vrot.slane %v250, 4
      %v252 = vadd.f32 %v250, %v251
      %v253 = vrot.slane %v252, 2
      %v254 = vadd.f32 %v252, %v253
      %v255 = vrot.slane %v254, 1
      %v256 = vadd.f32 %v254, %v255
      %v257 = vrcp.pop 2.0
      %v258 = vmul.f32 %v256, %v257
      %v259 = vsub.f32 %v248, %v258
      %v260 = vmul.f32 %v259, %v259
      %v261 = vsel %vm249, %v260, 0.0
      %v262 = vrot.slane %v261, 4
      %v263 = vadd.f32 %v261, %v262
      %v264 = vrot.slane %v263, 2
      %v265 = vadd.f32 %v263, %v264
      %v266 = vrot.slane %v265, 1
      %v267 = vadd.f32 %v265, %v266
      %v268 = vmul.f32 %v267, %v257
      %v269 = vlaneseq
      %v270 = vshrl.u32 %v269, 7
      %v271 = vsub.s32 0, %v270
      %v272 = vrot.slane %v240, %v271
      %v273 = vmul.f32 %v272, %v259
      %v274 = vadd.f32 %v268, 1e-05
      %v275 = vrsqrt.pop %v274
      %v276 = vmul.f32 %v273, %v275
      %v277 = vlaneseq
      %v278 = vshrl.u32 %v277, 7
      %v279 = vsub.s32 0, %v278
      %v280 = vrot.slane %v241, %v279
      %v281 = vadd.f32 %v276, %v280
      %282 = vst [vmem:[#allocation7] sm:$0x3] %v281
      %v283 = vld [vmem:[#allocation8] sm:$0xf]
      %v284 = vmul.f32 %v283, 0.25
      %v285 = vmul.f32 %v284, %v284
      %v288 = vunpack.c.l.s4 1983009808
      %v289 = vunpack.c.0.s8 %v288
      %v290 = vlaneseq
      %v291 = vshrl.u32 %v290, 7
      %v292 = vsub.s32 %v289, %v291
      %v293 = vrot.slane %v285, %v292
      %v294 = vcombine.high %v293, %v293
      %v297 = vsel %vm249, %v293, 0.0
      %v298 = vsel %vm249, %v294, 0.0
      %v299 = vadd.f32 %v297, %v298
      %300 = vadd.xlane.f32.xlu0 %v299
      %v301 = vpop.xlane.xlu0 %300
      %v302 = vmax.f32 %v301, 1e-24
      %v303 = vrsqrt.pop %v302
      %v306 = vunpack.c.l.s4 269488144
      %v307 = vunpack.c.0.s8 %v306
      %v308 = vlaneseq
      %v309 = vshrl.u32 %v308, 7
      %v310 = vsub.s32 %v307, %v309
      %v311 = vrot.slane %v303, %v310
      %v313 = vmul.f32 %v284, %v311
      %314 = vst [vmem:[#allocation8] sm:$0xf] %v313
    $region29: #{tpu_custom_call.1} parent=1 // pred_fallthru
      _
    // Predicated region
    $region30: #{tpu_custom_call.1} parent=1 // pred_check
      _
    $region31: #{tpu_custom_call.1} parent=1 // pred_check_branch
      %316 = sbr.rel (0) target = $region33
    $region32: #{tpu_custom_call.1} parent=1 // pred_region
      %s318 = ssub.s32 32, 32
      %319 = vsyncadd [#allocation4], %s318
      %s321 = sshll.u32 [#allocation7], 4
      %s322 = int_to_ptr.vmem [resolvable:$true] %s321
      %324 = dma.vmem_to_hbm [thread:$0]  %s322, 32, %s3, [#allocation4]
    $region33: #{tpu_custom_call.1} parent=1 // pred_fallthru
      _
    // Predicated region
    $region34: #{tpu_custom_call.1} parent=1 // pred_check
      _
    $region35: #{tpu_custom_call.1} parent=1 // pred_check_branch
      %326 = sbr.rel (0) target = $region37
    $region36: #{tpu_custom_call.1} parent=1 // pred_region
      %s328 = ssub.s32 64, 64
      %329 = vsyncadd [#allocation9], %s328
      %s331 = sshll.u32 [#allocation8], 4
      %s332 = int_to_ptr.vmem [resolvable:$true] %s331
      %334 = dma.vmem_to_hbm [thread:$0]  %s332, 64, %s4, [#allocation9]
    $region37: #{tpu_custom_call.1} parent=1 // pred_fallthru
      _
    // Predicated region
    $region38: #{tpu_custom_call.1} parent=1 // pred_check
      _
    $region39: #{tpu_custom_call.1} parent=1 // pred_check_branch
      %336 = sbr.rel (0) target = $region41
    $region40: #{tpu_custom_call.1} parent=1 // pred_region
      %337 = dma.done [#allocation4], 32
    $region41: #{tpu_custom_call.1} parent=1 // pred_fallthru
      _
    // Predicated region
    $region42: #{tpu_custom_call.1} parent=1 // pred_check
      _
    $region43: #{tpu_custom_call.1} parent=1 // pred_check_branch
      %339 = sbr.rel (0) target = $region45
    $region44: #{tpu_custom_call.1} parent=1 // pred_region
      %340 = dma.done [#allocation9], 64
    $region45: #{tpu_custom_call.1} parent=1 // pred_fallthru
      _
    %341 = vsyncpa [#allocation3], 1
    %342 = vsyncpa [#allocation6], 1
    %343 = vsyncpa [#allocation4], 1
    %344 = vsyncpa [#allocation9], 1

</llo_original>
